<compile_context>
chip_gen: v7x
topology: tpu7x:2x2x1
jax: 0.10.0
libtpu: 0.0.40
codegen_flags: <defaults>
</compile_context>

<pallas_src>
import functools

import jax
import jax.numpy as jnp
from jax import lax
from jax.experimental import pallas as pl
from jax.experimental.pallas import tpu as pltpu


def _lrp_lse_pool_kernel(lse_r, e, rkT_ref, aj_ref, o_ref, w_ref):
    """One grid step = one (batch, channel-tile, class).

    rkT_ref: [Ct, Cls]  relevance at pool output (channels-major, tiny)
    aj_ref:  [Ct, HW]   pool input, spatial flattened onto lanes (full dim)
    o_ref:   [Ct, HW]   relevance at pool input for class `cls`
    w_ref:   [Ct, HW]   f32 scratch: z / (ssum * denom), shared across classes
    """
    cls = pl.program_id(2)

    # Heavy part (spatial softmax + stabilized normalization) runs once per
    # (batch, channel-tile); the class axis only rescales and stores.
    @pl.when(cls == 0)
    def _():
        aj = aj_ref[...].astype(jnp.float32)                    # [Ct, HW]
        m = jnp.max(aj, axis=-1, keepdims=True)                 # [Ct, 1]
        ex = jnp.exp(lse_r * (aj - m))                          # [Ct, HW] (EUP)
        ssum = jnp.sum(ex, axis=-1, keepdims=True)              # [Ct, 1]
        az = aj * ex                                            # aJ * exp(r*(aJ-m))
        s_az = jnp.sum(az, axis=-1, keepdims=True)              # [Ct, 1]
        # zk = s_az/ssum; denom = zk + e*sign(zk); w = az/(ssum*denom)
        #   -> w = az / (s_az + e*ssum*sign(s_az))   (ssum > 0, sign(0) -> +1)
        sgn = jnp.where(s_az >= 0, 1.0, -1.0).astype(jnp.float32)
        coef = pl.reciprocal(s_az + e * ssum * sgn, approx=False)
        w_ref[...] = az * coef

    # Per-class scale: pick column `cls` of the tiny [Ct, Cls] slab with a masked
    # lane reduce (avoids a dynamic lane slice).
    rkT = rkT_ref[...].astype(jnp.float32)                      # [Ct, Cls]
    lane = lax.broadcasted_iota(jnp.int32, rkT.shape, 1)
    rk_col = jnp.sum(jnp.where(lane == cls, rkT, 0.0),
                     axis=-1, keepdims=True)                    # [Ct, 1]

    o_ref[...] = (rk_col * w_ref[...]).astype(o_ref.dtype)


def _vmem_capacity_bytes():
    try:
        info = pltpu.get_tpu_info()
        for name in ("vmem_capacity_bytes", "vmem_size_bytes"):
            v = getattr(info, name, None)
            if v:
                return int(v)
    except Exception:
        pass
    return 64 * 1024 * 1024  # conservative default (v7x per-TC VMEM)


def _pick_channel_tile(C, HW, Cls, in_elt, out_elt, budget, need_split):
    """Largest channel tile (multiple of 8 dividing C, or C itself) fitting budget."""
    hwp = ((HW + 127) // 128) * 128        # lane padding (vreg), estimate only

    def est(ct):
        ctp = ((ct + 7) // 8) * 8          # sublane padding, estimate only
        return (2 * ctp * hwp * in_elt     # aJ block, double-buffered
                + 2 * ctp * 128 * 4        # rK block (lane-padded), double-buffered
                + 2 * ctp * hwp * out_elt  # out block, double-buffered
                + ctp * hwp * 4            # w scratch
                + 4 * ctp * hwp * 4        # in-kernel f32 temporaries (aj/ex/az/...)
                + (2 << 20))               # margin for compiler scratch

    cands = {C}
    t = 8
    while t < C:
        if C % t == 0:
            cands.add(t)
        t += 8
    cands = sorted(cands, reverse=True)

    ct = next((t for t in cands if est(t) <= budget), cands[-1])

    # Megacore: make sure the parallel grid has >= 2 programs when B == 1.
    if need_split and (C // ct) < 2:
        smaller = [t for t in cands if t < ct]
        if smaller:
            ct = smaller[0]
    return ct


def lrp_logsumexp_pool(rK, aJ, lse_r=6, e=1e-2, out_dtype=None):
    """LRP-epsilon backward pass through LogSumExp spatial pooling (ISNet-Ze)."""
    B, C, H, W = aJ.shape
    if rK.ndim == 5:                                  # [B, Cls, C, 1, 1] -> [B, Cls, C]
        rK = rK.reshape(rK.shape[0], rK.shape[1], rK.shape[2])
    assert rK.ndim == 3 and rK.shape[0] == B and rK.shape[2] == C
    Cls = rK.shape[1]
    HW = H * W
    if out_dtype is None:
        out_dtype = rK.dtype                          # pass jnp.bfloat16 to halve writes

    aj2 = aJ.reshape(B, C, HW)                        # no HBM pad: block last dim = HW
    rkT = jnp.transpose(rK, (0, 2, 1))                # [B, C, Cls] (tiny)

    in_elt = aj2.dtype.itemsize
    out_elt = jnp.dtype(out_dtype).itemsize

    capacity = _vmem_capacity_bytes()
    budget = int(max(16 << 20, min(capacity // 2, 96 << 20)))

    Ct = _pick_channel_tile(C, HW, Cls, in_elt, out_elt, budget, need_split=(B < 2))
    n_ct = C // Ct

    # NOTE: lse_r / e are baked in as compile-time constants (they are module
    # constructor constants). If they vary at runtime, pass them as SMEM scalars.
    kernel = functools.partial(_lrp_lse_pool_kernel, float(lse_r), float(e))

    out = pl.pallas_call(
        kernel,
        grid=(B, n_ct, Cls),                          # class axis innermost: aJ stays
        in_specs=[                                    # resident, w computed once/tile
            pl.BlockSpec((None, Ct, Cls), lambda b, ci, cls: (b, ci, 0)),
            pl.BlockSpec((None, Ct, HW), lambda b, ci, cls: (b, ci, 0)),
        ],
        out_specs=pl.BlockSpec((None, None, Ct, HW),
                               lambda b, ci, cls: (b, cls, ci, 0)),
        out_shape=jax.ShapeDtypeStruct((B, Cls, C, HW), out_dtype),
        scratch_shapes=[pltpu.VMEM((Ct, HW), jnp.float32)],
        compiler_params=pltpu.CompilerParams(
            dimension_semantics=("parallel", "parallel", "arbitrary"),
            vmem_limit_bytes=budget),
    )(rkT, aj2)

    return out.reshape(B, Cls, C, H, W)               # trivial split of last dim


if __name__ == "__main__":
    key = jax.random.PRNGKey(0)
    B, Cls, C, H, W = 2, 3, 4, 16, 16
    lse_r, e = 6.0, 1e-2
    k1, k2 = jax.random.split(key)

    # LSE pooling input: post-ReLU feature map; per-class relevance at pool output
    aJ = jax.nn.relu(jax.random.normal(k1, (B, C, H, W), jnp.float32))
    rK = jax.random.normal(k2, (B, Cls, C), jnp.float32)

    rJ = lrp_logsumexp_pool(rK, aJ, lse_r=lse_r, e=e)
    jax.block_until_ready(rJ)
    assert rJ.shape == (B, Cls, C, H, W)

    # pure-JAX reference of the same epsilon rule
    flat = aJ.reshape(B, C, H * W).astype(jnp.float32)
    p = jax.nn.softmax(lse_r * flat, axis=-1)
    z = flat * p
    zk = z.sum(-1, keepdims=True)
    denom = zk + e * jnp.where(zk >= 0, 1.0, -1.0)
    ref = (rK[:, :, :, None] * (z / denom)[:, None]).reshape(B, Cls, C, H, W)
    assert jnp.allclose(rJ, ref, rtol=1e-3, atol=1e-5), \
        float(jnp.max(jnp.abs(rJ - ref)))

    print("KERNEL_OK")
</pallas_src>

<mosaic_0001>
module attributes {stable_mosaic.version = 11 : i64} {
  func.func @_lrp_lse_pool_kernel(%arg0: i32, %arg1: i32, %arg2: i32, %arg3: memref<1x4x3xf32, #tpu.memory_space<vmem>>, %arg4: memref<1x4x256xf32, #tpu.memory_space<vmem>>, %arg5: memref<1x1x4x256xf32, #tpu.memory_space<vmem>>, %arg6: memref<4x256xf32, #tpu.memory_space<vmem>>) attributes {dimension_semantics = [#tpu.dimension_semantics<parallel>, #tpu.dimension_semantics<parallel>, #tpu.dimension_semantics<arbitrary>], iteration_bounds = array<i64: 2, 1, 3>, scalar_prefetch = 0 : i64, scratch_operands = 1 : i64, tpu.core_type = #tpu.core_type<tc>, window_params = [{transform_indices = @transform_0, window_bounds = array<i64: 1, 4, 3>}, {transform_indices = @transform_1, window_bounds = array<i64: 1, 4, 256>}, {transform_indices = @transform_2, window_bounds = array<i64: 1, 1, 4, 256>}]} {
    %c0_i32 = arith.constant 0 : i32
    %0 = arith.cmpi eq, %arg2, %c0_i32 : i32
    %1 = arith.extui %0 : i1 to i32
    %c0_i32_0 = arith.constant 0 : i32
    %2 = arith.cmpi ne, %1, %c0_i32_0 : i32
    scf.if %2 {
      %c0_10 = arith.constant 0 : index
      %c0_11 = arith.constant 0 : index
      %c0_12 = arith.constant 0 : index
      %18 = vector.load %arg4[%c0_10, %c0_11, %c0_12] : memref<1x4x256xf32, #tpu.memory_space<vmem>>, vector<1x4x256xf32>
      %19 = vector.shape_cast %18 : vector<1x4x256xf32> to vector<4x256xf32>
      %cst_13 = arith.constant dense<0xFF800000> : vector<4xf32>
      %20 = vector.multi_reduction <maximumf>, %19, %cst_13 [1] : vector<4x256xf32> to vector<4xf32>
      %21 = vector.shape_cast %20 : vector<4xf32> to vector<4x1xf32>
      %22 = vector.broadcast %21 : vector<4x1xf32> to vector<4x256xf32>
      %23 = arith.subf %19, %22 : vector<4x256xf32>
      %cst_14 = arith.constant 6.000000e+00 : f32
      %24 = vector.broadcast %cst_14 : f32 to vector<4x256xf32>
      %25 = arith.mulf %24, %23 : vector<4x256xf32>
      %26 = math.exp %25 : vector<4x256xf32>
      %cst_15 = arith.constant dense<0.000000e+00> : vector<4xf32>
      %27 = vector.multi_reduction <add>, %26, %cst_15 [1] : vector<4x256xf32> to vector<4xf32>
      %28 = vector.shape_cast %27 : vector<4xf32> to vector<4x1xf32>
      %29 = arith.mulf %19, %26 : vector<4x256xf32>
      %cst_16 = arith.constant dense<0.000000e+00> : vector<4xf32>
      %30 = vector.multi_reduction <add>, %29, %cst_16 [1] : vector<4x256xf32> to vector<4xf32>
      %31 = vector.shape_cast %30 : vector<4xf32> to vector<4x1xf32>
      %cst_17 = arith.constant 0.000000e+00 : f32
      %32 = vector.broadcast %cst_17 : f32 to vector<4x1xf32>
      %33 = arith.cmpf oge, %31, %32 : vector<4x1xf32>
      %cst_18 = arith.constant 1.000000e+00 : f32
      %cst_19 = arith.constant -1.000000e+00 : f32
      %34 = vector.broadcast %cst_18 : f32 to vector<4x1xf32>
      %35 = vector.broadcast %cst_19 : f32 to vector<4x1xf32>
      %36 = arith.select %33, %34, %35 : vector<4x1xi1>, vector<4x1xf32>
      %cst_20 = arith.constant 0.00999999977 : f32
      %37 = vector.broadcast %cst_20 : f32 to vector<4x1xf32>
      %38 = arith.mulf %37, %28 : vector<4x1xf32>
      %39 = arith.mulf %38, %36 : vector<4x1xf32>
      %40 = arith.addf %31, %39 : vector<4x1xf32>
      %41 = tpu.reciprocal %40 : vector<4x1xf32> -> vector<4x1xf32>
      %42 = vector.broadcast %41 : vector<4x1xf32> to vector<4x256xf32>
      %43 = arith.mulf %29, %42 : vector<4x256xf32>
      %c0_21 = arith.constant 0 : index
      %c0_22 = arith.constant 0 : index
      %44 = vector.load %arg6[%c0_21, %c0_22] : memref<4x256xf32, #tpu.memory_space<vmem>>, vector<4x256xf32>
      tpu.vector_store %arg6[%c0_21, %c0_22], %43 {strides = array<i32>} : memref<4x256xf32, #tpu.memory_space<vmem>>, vector<4x256xf32>,
    } else {
    }
    %c0 = arith.constant 0 : index
    %c0_1 = arith.constant 0 : index
    %c0_2 = arith.constant 0 : index
    %3 = vector.load %arg3[%c0, %c0_1, %c0_2] : memref<1x4x3xf32, #tpu.memory_space<vmem>>, vector<1x4x3xf32>
    %4 = vector.shape_cast %3 : vector<1x4x3xf32> to vector<4x3xf32>
    %5 = tpu.iota {dimensions = array<i32: 1>} : vector<4x3xi32>
    %6 = vector.broadcast %arg2 : i32 to vector<4x3xi32>
    %7 = arith.cmpi eq, %5, %6 : vector<4x3xi32>
    %cst = arith.constant 0.000000e+00 : f32
    %8 = vector.broadcast %cst : f32 to vector<4x3xf32>
    %9 = arith.select %7, %4, %8 : vector<4x3xi1>, vector<4x3xf32>
    %cst_3 = arith.constant dense<0.000000e+00> : vector<4xf32>
    %10 = vector.multi_reduction <add>, %9, %cst_3 [1] : vector<4x3xf32> to vector<4xf32>
    %11 = vector.shape_cast %10 : vector<4xf32> to vector<4x1xf32>
    %c0_4 = arith.constant 0 : index
    %c0_5 = arith.constant 0 : index
    %12 = vector.load %arg6[%c0_4, %c0_5] : memref<4x256xf32, #tpu.memory_space<vmem>>, vector<4x256xf32>
    %13 = vector.broadcast %11 : vector<4x1xf32> to vector<4x256xf32>
    %14 = arith.mulf %13, %12 : vector<4x256xf32>
    %c0_6 = arith.constant 0 : index
    %c0_7 = arith.constant 0 : index
    %c0_8 = arith.constant 0 : index
    %c0_9 = arith.constant 0 : index
    %15 = vector.load %arg5[%c0_6, %c0_7, %c0_8, %c0_9] : memref<1x1x4x256xf32, #tpu.memory_space<vmem>>, vector<1x1x4x256xf32>
    %16 = vector.shape_cast %15 : vector<1x1x4x256xf32> to vector<4x256xf32>
    %17 = vector.shape_cast %14 : vector<4x256xf32> to vector<1x1x4x256xf32>
    tpu.vector_store %arg5[%c0_6, %c0_7, %c0_8, %c0_9], %17 {strides = array<i32>} : memref<1x1x4x256xf32, #tpu.memory_space<vmem>>, vector<1x1x4x256xf32>,
    return
  }
  func.func @transform_0(%arg0: i32, %arg1: i32, %arg2: i32) -> (i32, i32, i32) {
    %c0_i32 = arith.constant 0 : i32
    %c0_i32_0 = arith.constant 0 : i32
    return %arg0, %arg1, %c0_i32 : i32, i32, i32
  }
  func.func @transform_1(%arg0: i32, %arg1: i32, %arg2: i32) -> (i32, i32, i32) {
    %c0_i32 = arith.constant 0 : i32
    %c0_i32_0 = arith.constant 0 : i32
    return %arg0, %arg1, %c0_i32 : i32, i32, i32
  }
  func.func @transform_2(%arg0: i32, %arg1: i32, %arg2: i32) -> (i32, i32, i32, i32) {
    %c0_i32 = arith.constant 0 : i32
    %c0_i32_0 = arith.constant 0 : i32
    return %arg0, %arg2, %arg1, %c0_i32 : i32, i32, i32, i32
  }
}

</mosaic_0001>

<llo_original>
// kernel: tpu_custom_call.1
$region0: #{tpu_custom_call.1}
  #allocation0 [shape = 'u32[]', space=smem, size = 0x4, offset = 0x4, fixed_abs, tag = 'smem constant byte address 0x4 - core index']
  #allocation1 [shape = 'u32[144,128]{1,0:T(1,128)}', space=vmem, size = 0x12000, scoped, tag = 'internal scratch']
  #allocation2 [shape = 'f32[4,256]{1,0:T(4,128)}', space=vmem, size = 0x1000, scoped, tag = 'scratch operand']
  %s0 = inlined_call_operand.vmem [shape: f32[2,4,3], index: 0, kind: input, shape index: {}]
  %s1 = inlined_call_operand.vmem [shape: f32[2,4,256], index: 1, kind: input, shape index: {}]
  %s2 = inlined_call_operand.hbm [shape: f32[2,3,4,256], index: 2, kind: output, shape index: {}]
  %s3 = sld [smem:[#allocation0]]
  $region45: #{tpu_custom_call.1} parent=0
    _
  %s5 = ssub.s32 1, %s3
  %s6 = scalar_select 0, %s5, %s3
  $region1: #{tpu_custom_call.1} parent=0
    #allocation3 [shape = 'u8[8192]{0}', space=vmem, size = 0x2000, scoped, tag = 'output window, operand 0']
    #allocation4 [shape = 's32[2]{0}', space=sflag, size = 0x8, scoped, tag = 'scoped memory for tpu_custom_call.1']
    %7 = vsyncpa [#allocation4], 0
    %s8 = scalar_lea.sflag [#allocation4], 1
    %9 = vsyncpa %s8, 0
    loop: start=0, step=1, limit=8
    $region2: #{tpu_custom_call.1} parent=1 // loop_pre_header
      _
    $region3: #{tpu_custom_call.1} parent=1 // loop_header
      %s11 = sphi 0, %s15
      %p12 = scmp.ge.s32.totalorder %s11, 8
      %s18 = sphi 0, %s37
      %s19 = sphi 0, %s33
      %s20 = sphi 0, %s29
      %s21 = sphi 0, %s18
      %s22 = sphi 0, %s19
      %s23 = sphi 0, %s20
      %s24 = sphi 0, %s21
      %s25 = sphi 0, %s22
      %s26 = sphi 0, %s23
      %s42 = sphi 0, %s44
      %s45 = sphi 0, %s42
      %s46 = sphi 0, %s45
      %s62 = sphi 0, %s46
      %s70 = sphi 0, %s72
      %s73 = sphi 0, %s70
      %s74 = sphi 0, %s73
      %s90 = sphi 0, %s74
      %s100 = sphi 0, %s102
      %s103 = sphi 0, %s100
      %s104 = sphi 0, %s103
      %s120 = sphi 0, %s104
    $region4: #{tpu_custom_call.1} parent=1 // loop_header_branch
      %14 = sbr.rel (%p12) target = $region8
    $region5: #{tpu_custom_call.1} parent=1 // loop_body
      %s16 = ssub.s32 %s11, 1
      %s17 = ssub.s32 %s11, 2
      %s27 = sadd.s32 1, %s20
      %p28 = scmp.ge.s32.totalorder %s27, 3
      %s29 = scalar_select %p28, 0, %s27
      %s30 = sadd.s32 1, %s19
      %s31 = scalar_select %p28, %s30, %s19
      %p32 = scmp.ge.s32.totalorder %s31, 1
      %s33 = scalar_select %p32, 0, %s31
      %s34 = sadd.s32 1, %s18
      %s35 = scalar_select %p32, %s34, %s18
      %p36 = scmp.ge.s32.totalorder %s35, 2
      %s37 = scalar_select %p36, 0, %s35
      %s38 = ssub.s32 %s18, %s37
      %s39 = ssub.s32 %s19, %s33
      %s40 = sor.u32 %s38, %s39
      %p41 = scmp.eq.s32.totalorder %s40, 0
      %s43 = sadd.s32 %s42, 1
      %s44 = scalar_select %p41, %s42, %s43
      %p47 = pneg %p41
      %p48 = scmp.eq.s32.totalorder %s11, 5
      %p49 = por %p47, %p48
      %p50 = scmp.ne.s32.totalorder %s42, %s45
      %p51 = scmp.eq.s32.totalorder %s11, 0
      %p52 = por %p50, %p51
      %p53 = scmp.ne.s32.totalorder %s42, %s45
      %p54 = scmp.eq.s32.totalorder %s16, 5
      %p55 = por %p53, %p54
      %p56 = scmp.ne.s32.totalorder %s45, %s46
      %p57 = scmp.eq.s32.totalorder %s16, 0
      %p58 = por %p56, %p57
      %p59 = scmp.ne.s32.totalorder %s45, %s46
      %p60 = scmp.eq.s32.totalorder %s17, 5
      %p61 = por %p59, %p60
      %p63 = scmp.ne.s32.totalorder %s46, %s62
      %p64 = scmp.eq.s32.totalorder %s17, 0
      %p65 = por %p63, %p64
      %s66 = ssub.s32 %s18, %s37
      %s67 = ssub.s32 %s19, %s33
      %s68 = sor.u32 %s66, %s67
      %p69 = scmp.eq.s32.totalorder %s68, 0
      %s71 = sadd.s32 %s70, 1
      %s72 = scalar_select %p69, %s70, %s71
      %p75 = pneg %p69
      %p76 = scmp.eq.s32.totalorder %s11, 5
      %p77 = por %p75, %p76
      %p78 = scmp.ne.s32.totalorder %s70, %s73
      %p79 = scmp.eq.s32.totalorder %s11, 0
      %p80 = por %p78, %p79
      %p81 = scmp.ne.s32.totalorder %s70, %s73
      %p82 = scmp.eq.s32.totalorder %s16, 5
      %p83 = por %p81, %p82
      %p84 = scmp.ne.s32.totalorder %s73, %s74
      %p85 = scmp.eq.s32.totalorder %s16, 0
      %p86 = por %p84, %p85
      %p87 = scmp.ne.s32.totalorder %s73, %s74
      %p88 = scmp.eq.s32.totalorder %s17, 5
      %p89 = por %p87, %p88
      %p91 = scmp.ne.s32.totalorder %s74, %s90
      %p92 = scmp.eq.s32.totalorder %s17, 0
      %p93 = por %p91, %p92
      %s94 = ssub.s32 %s18, %s37
      %s95 = ssub.s32 %s20, %s29
      %s96 = sor.u32 %s94, %s95
      %s97 = ssub.s32 %s19, %s33
      %s98 = sor.u32 %s96, %s97
      %p99 = scmp.eq.s32.totalorder %s98, 0
      %s101 = sadd.s32 %s100, 1
      %s102 = scalar_select %p99, %s100, %s101
      %p105 = pneg %p99
      %p106 = scmp.eq.s32.totalorder %s11, 5
      %p107 = por %p105, %p106
      %p108 = scmp.ne.s32.totalorder %s100, %s103
      %p109 = scmp.eq.s32.totalorder %s11, 0
      %p110 = por %p108, %p109
      %p111 = scmp.ne.s32.totalorder %s100, %s103
      %p112 = scmp.eq.s32.totalorder %s16, 5
      %p113 = por %p111, %p112
      %p114 = scmp.ne.s32.totalorder %s103, %s104
      %p115 = scmp.eq.s32.totalorder %s16, 0
      %p116 = por %p114, %p115
      %p117 = scmp.ne.s32.totalorder %s103, %s104
      %p118 = scmp.eq.s32.totalorder %s17, 5
      %p119 = por %p117, %p118
      %p121 = scmp.ne.s32.totalorder %s104, %s120
      %p122 = scmp.eq.s32.totalorder %s17, 0
      %p123 = por %p121, %p122
      %p124 = scmp.le.s32.totalorder 1, %s11
      %p125 = scmp.lt.s32.totalorder %s11, 7
      %p126 = pnand %p124, %p125
      %p127 = pneg %p126
      // Predicated region
      $region9: #{tpu_custom_call.1} parent=5 // pred_check
        _
      $region10: #{tpu_custom_call.1} parent=5 // pred_check_branch
        %129 = sbr.rel (%p126) target = $region12
      $region11: #{tpu_custom_call.1} parent=5 // pred_region
        %s130 = ssub.s32 %s11, 1
      $region12: #{tpu_custom_call.1} parent=5 // pred_fallthru
        _
      %p131 = scmp.lt.s32.totalorder %s11, 6
      // Predicated region
      $region13: #{tpu_custom_call.1} parent=5 // pred_check
        %p132 = pneg %p131
      $region14: #{tpu_custom_call.1} parent=5 // pred_check_branch
        %134 = sbr.rel (%p132) target = $region16
      $region15: #{tpu_custom_call.1} parent=5 // pred_region
        // Predicated region
        $region17: #{tpu_custom_call.1} parent=15 // pred_check
          %p135 = pneg %p52
        $region18: #{tpu_custom_call.1} parent=15 // pred_check_branch
          %137 = sbr.rel (%p135) target = $region20
        $region19: #{tpu_custom_call.1} parent=15 // pred_region
          %p138 = scmp.lt.s32.totalorder %s18, 1
          %s139 = scalar_select %p138, %s18, 1
          %p140 = scmp.lt.s32.totalorder %s19, 0
          %s141 = scalar_select %p140, %s19, 0
          %s142 = sadd.s32 %s141, %s139
          %s143 = smul.addr %s142, 4
          %s144 = scalar_lea.vmem %s0, %s143
        $region20: #{tpu_custom_call.1} parent=15 // pred_fallthru
          _
        // Predicated region
        $region21: #{tpu_custom_call.1} parent=15 // pred_check
          %p145 = pneg %p80
        $region22: #{tpu_custom_call.1} parent=15 // pred_check_branch
          %147 = sbr.rel (%p145) target = $region24
        $region23: #{tpu_custom_call.1} parent=15 // pred_region
          %p148 = scmp.lt.s32.totalorder %s18, 1
          %s149 = scalar_select %p148, %s18, 1
          %p150 = scmp.lt.s32.totalorder %s19, 0
          %s151 = scalar_select %p150, %s19, 0
          %s152 = smul.addr %s151, 2
          %s153 = smul.addr %s149, 2
          %s154 = sadd.s32 %s152, %s153
          %s155 = smul.addr %s154, 4
          %s156 = scalar_lea.vmem %s1, %s155
        $region24: #{tpu_custom_call.1} parent=15 // pred_fallthru
          _
      $region16: #{tpu_custom_call.1} parent=5 // pred_fallthru
        _
      %p157 = scmp.le.s32.totalorder 1, %s11
      %p158 = scmp.lt.s32.totalorder %s11, 7
      %p159 = pnand %p157, %p158
      %p160 = pneg %p159
      // Predicated region
      $region25: #{tpu_custom_call.1} parent=5 // pred_check
        _
      $region26: #{tpu_custom_call.1} parent=5 // pred_check_branch
        %162 = sbr.rel (%p159) target = $region28
      $region27: #{tpu_custom_call.1} parent=5 // pred_region
        %s163 = ssub.s32 %s11, 1
        %p164 = scmp.lt.s32.totalorder %s21, 1
        %s165 = scalar_select %p164, %s21, 1
        %p166 = scmp.lt.s32.totalorder %s22, 0
        %s167 = scalar_select %p166, %s22, 0
        %s168 = sadd.s32 %s167, %s165
        %s169 = smul.addr %s168, 4
        %s170 = scalar_lea.vmem %s0, %s169
        %p171 = pneg %p58
        %p172 = pneg %p55
        %p173 = scmp.lt.s32.totalorder %s21, 1
        %s174 = scalar_select %p173, %s21, 1
        %p175 = scmp.lt.s32.totalorder %s22, 0
        %s176 = scalar_select %p175, %s22, 0
        %s177 = smul.addr %s176, 2
        %s178 = smul.addr %s174, 2
        %s179 = sadd.s32 %s177, %s178
        %s180 = smul.addr %s179, 4
        %s181 = scalar_lea.vmem %s1, %s180
        %p182 = pneg %p86
        %p183 = pneg %p83
        %p184 = pneg %p116
        %p185 = pneg %p113
        %s186 = sand.u32 %s103, 1
        %s187 = scalar_lea.sflag [#allocation4], %s186
        %s188 = sand.u32 %s103, 1
        %s189 = smul.addr %s188, 8
        %s190 = scalar_lea.vmem [#allocation3], %s189
        %p191 = scmp.lt.s32.totalorder %s21, 1
        %s192 = scalar_select %p191, %s21, 1
        %p193 = scmp.lt.s32.totalorder %s22, 0
        %s194 = scalar_select %p193, %s22, 0
        %s195 = sadd.s32 %s194, %s192
        %s196 = smul.addr %s195, 4
        %s197 = scalar_lea.vmem %s0, %s196
        %p198 = scmp.lt.s32.totalorder %s21, 1
        %s199 = scalar_select %p198, %s21, 1
        %p200 = scmp.lt.s32.totalorder %s22, 0
        %s201 = scalar_select %p200, %s22, 0
        %s202 = smul.addr %s201, 2
        %s203 = smul.addr %s199, 2
        %s204 = sadd.s32 %s202, %s203
        %s205 = smul.addr %s204, 4
        %s206 = scalar_lea.vmem %s1, %s205
        %p207 = scmp.eq.s32.totalorder %s23, 0
        // Predicated region
        $region29: #{tpu_custom_call.1} parent=27 // pred_check
          %p208 = pneg %p207
        $region30: #{tpu_custom_call.1} parent=27 // pred_check_branch
          %210 = sbr.rel (%p208) target = $region32
        $region31: #{tpu_custom_call.1} parent=27 // pred_region
          %v211 = vld [vmem:[%s206] sm:$0xff]
          %v213 = vcombine.high %v211, %v211
          %vm215 = vcmask 1043456
          %v216 = vsel %vm215, %v211, -inf
          %v217 = vsel %vm215, %v213, -inf
          %v218 = vmax.f32 %v216, %v217
          %219 = vmax.xlane.f32.xlu0 %v218
          %v220 = vpop.xlane.xlu0 %219
          %v223 = vunpack.c.l.s4 839922192
          %v224 = vunpack.c.0.s8 %v223
          %v225 = vlaneseq
          %v226 = vshrl.u32 %v225, 7
          %v227 = vsub.s32 %v224, %v226
          %v228 = vrot.slane %v220, %v227
          %v230 = vsub.f32 %v211, %v228
          %v231 = vmul.f32 %v230, 6.0
          %v232 = vmul.f32 %v231, 1.442695
          %v233 = vpow.pop %v232
          %v235 = vcombine.high %v233, %v233
          %v237 = vsel %vm215, %v233, 0.0
          %v238 = vsel %vm215, %v235, 0.0
          %v239 = vadd.f32 %v237, %v238
          %240 = vadd.xlane.f32.xlu0 %v239
          %v241 = vpop.xlane.xlu0 %240
          %v242 = vmul.f32 %v211, %v233
          %v244 = vcombine.high %v242, %v242
          %v246 = vsel %vm215, %v242, 0.0
          %v247 = vsel %vm215, %v244, 0.0
          %v248 = vadd.f32 %v246, %v247
          %249 = vadd.xlane.f32.xlu0 %v248
          %v250 = vpop.xlane.xlu0 %249
          %vm251 = vcmp.ge.f32.partialorder %v250, 0.0
          %v252 = vsel %vm251, 1.0, -1.0
          %v253 = vmul.f32 %v241, 0.01
          %v254 = vmul.f32 %v253, %v252
          %v255 = vadd.f32 %v250, %v254
          %v256 = vrcp.pop %v255
          %v259 = vunpack.c.l.s4 839922192
          %v260 = vunpack.c.0.s8 %v259
          %v261 = vlaneseq
          %v262 = vshrl.u32 %v261, 7
          %v263 = vsub.s32 %v260, %v262
          %v264 = vrot.slane %v256, %v263
          %v266 = vmul.f32 %v242, %v264
          %267 = vst [vmem:[#allocation2] sm:$0xff] %v266
        $region32: #{tpu_custom_call.1} parent=27 // pred_fallthru
          _
        %v268 = vld [vmem:[%s197] sm:$0xf]
        %v269 = vlaneseq
        %v270 = vand.u32 %v269, 127
        %v271 = vstv %s23
        %vm272 = vcmp.eq.s32.totalorder %v270, %v271
        %v273 = vsel %vm272, %v268, 0.0
        %vm274 = vcmask 19456
        %v275 = vsel %vm274, %v273, 0.0
        %276 = vadd.xlane.f32.xlu0 %v275
        %v277 = vpop.xlane.xlu0 %276
        %v278 = vld [vmem:[#allocation2] sm:$0xff]
        %v280 = vcombine.high %v278, %v278
        %v282 = vmul.f32 %v277, %v278
        %v283 = vmul.f32 %v277, %v280
        %v286 = vcombine.low %v282, %v283
        %288 = vst [vmem:[%s190] sm:$0xff] %v286
        %s289 = sand.u32 %s103, 1
        %s290 = scalar_lea.sflag [#allocation4], %s289
        %s291 = sand.u32 %s103, 1
        %s292 = smul.addr %s291, 8
        %s293 = scalar_lea.vmem [#allocation3], %s292
        // Predicated region
        $region33: #{tpu_custom_call.1} parent=27 // pred_check
          %p294 = pneg %p113
        $region34: #{tpu_custom_call.1} parent=27 // pred_check_branch
          %296 = sbr.rel (%p294) target = $region36
        $region35: #{tpu_custom_call.1} parent=27 // pred_region
          %s298 = ssub.s32 128, 128
          %299 = vsyncadd %s290, %s298
          %s300 = smul.addr %s22, 2
          %s301 = smul.addr %s23, 2
          %s302 = sadd.s32 %s300, %s301
          %s303 = smul.addr %s21, 6
          %s304 = sadd.s32 %s302, %s303
          %s305 = smul.addr %s304, 64
          %s306 = scalar_lea.hbm %s2, %s305
          %s308 = sshll.u32 %s293, 4
          %s309 = int_to_ptr.vmem [resolvable:$true] %s308
          %311 = dma.vmem_to_hbm [thread:$0]  %s309, 128, %s306, %s290
        $region36: #{tpu_custom_call.1} parent=27 // pred_fallthru
          _
      $region28: #{tpu_custom_call.1} parent=5 // pred_fallthru
        _
      %p312 = scmp.le.s32.totalorder 2, %s11
      // Predicated region
      $region37: #{tpu_custom_call.1} parent=5 // pred_check
        %p313 = pneg %p312
      $region38: #{tpu_custom_call.1} parent=5 // pred_check_branch
        %315 = sbr.rel (%p313) target = $region40
      $region39: #{tpu_custom_call.1} parent=5 // pred_region
        %s316 = ssub.s32 %s11, 2
        // Predicated region
        $region41: #{tpu_custom_call.1} parent=39 // pred_check
          %p317 = pneg %p119
        $region42: #{tpu_custom_call.1} parent=39 // pred_check_branch
          %319 = sbr.rel (%p317) target = $region44
        $region43: #{tpu_custom_call.1} parent=39 // pred_region
          %s320 = sand.u32 %s104, 1
          %s321 = scalar_lea.sflag [#allocation4], %s320
          %s322 = sand.u32 %s104, 1
          %s323 = smul.addr %s322, 8
          %s324 = scalar_lea.vmem [#allocation3], %s323
          %325 = dma.done %s321, 128
        $region44: #{tpu_custom_call.1} parent=39 // pred_fallthru
          _
      $region40: #{tpu_custom_call.1} parent=5 // pred_fallthru
        _
    $region6: #{tpu_custom_call.1} parent=1 // loop_footer
      %s15 = sadd.s32 1, %s11
    $region7: #{tpu_custom_call.1} parent=1 // loop_footer_branch
      %10 = sbr.rel target = $region3
    $region8: #{tpu_custom_call.1} parent=1 // loop_exit
      _
    %326 = vsyncpa [#allocation4], 1
    %s327 = scalar_lea.sflag [#allocation4], 1
    %328 = vsyncpa %s327, 1

</llo_original>
